<compile_context>
chip_gen: v7x
topology: tpu7x:2x2x1
jax: 0.10.0
libtpu: 0.0.40
codegen_flags: <defaults>
</compile_context>

<pallas_src>
import jax
import jax.numpy as jnp
from jax.experimental import pallas as pl
from jax.experimental.pallas import tpu as pltpu


def angular_proto_kernel(x_ref, w_ref, b_ref, loss_ref, prec_ref):
    x = x_ref[...].astype(jnp.float32)              # (N, M, D)
    N, M, _ = x.shape

    # out_positive = x[:, 0, :]  (sublane index 0: aligned)
    out_positive = x[:, 0, :]                       # (N, D)
    # out_anchor = mean(x[:, 1:, :], axis=1) computed as a full-tile sublane sum
    # minus the (already loaded) positive — avoids a non-8-aligned sublane slice.
    out_anchor = (jnp.sum(x, axis=1) - out_positive) * (1.0 / (M - 1))   # (N, D)

    # L2 normalization with eps clamp (eps = 1e-8, per-vector clamp; matches
    # F.cosine_similarity up to its product-of-norms clamp for near-zero inputs).
    eps = 1e-8
    pos_ss = jnp.sum(out_positive * out_positive, axis=-1, keepdims=True)   # (N, 1)
    anc_ss = jnp.sum(out_anchor * out_anchor, axis=-1, keepdims=True)       # (N, 1)
    pos_n = out_positive * jax.lax.rsqrt(jnp.maximum(pos_ss, eps * eps))    # (N, D)
    anc_n = out_anchor * jax.lax.rsqrt(jnp.maximum(anc_ss, eps * eps))      # (N, D)

    # NOTE: torch.clamp(self.w, 1e-06) in the reference is a no-op (result unused).
    w = w_ref[0]
    b = b_ref[0]

    # (N, N) scaled cosine-sim logits: rows = positives, cols = anchors (contract on D).
    cos = jax.lax.dot_general(
        pos_n, anc_n, (((1,), (1,)), ((), ())),
        preferred_element_type=jnp.float32)
    logits = cos * w + b                            # (N, N)

    # Diagonal logits directly from the rowwise dot (reuses normalized operands;
    # removes the (N,N) iota/mask/masked-reduce of the previous version).
    diag = jnp.sum(pos_n * anc_n, axis=-1, keepdims=True) * w + b   # (N, 1)

    # Cross-entropy with label[i] = i (diagonal targets), mean reduction.
    rowmax = jnp.max(logits, axis=1, keepdims=True)                 # (N, 1)
    lse = rowmax + jnp.log(jnp.sum(jnp.exp(logits - rowmax), axis=1, keepdims=True))
    per_row_loss = lse - diag                                       # (N, 1)
    loss_ref[0] = jnp.sum(per_row_loss) * (1.0 / N)

    # Top-1 accuracy (%): argmax = first column achieving the row max
    # (keeps torch's first-max tie-breaking exactly; uses matmul logits only,
    # so no mismatch with the VPU-computed diag).
    col = jax.lax.broadcasted_iota(jnp.int32, (N, N), 1)
    first_max_idx = jnp.min(jnp.where(logits == rowmax, col, N),
                            axis=1, keepdims=True)                  # (N, 1)
    label = jax.lax.broadcasted_iota(jnp.int32, (N, 1), 0)
    correct = (first_max_idx == label).astype(jnp.float32)          # (N, 1)
    prec_ref[0] = jnp.sum(correct) * (100.0 / N)


def angular_proto(x, w, b):
    """x: (N, M, D) float32, M >= 2; w, b: python floats / 0-d arrays."""
    assert x.shape[1] >= 2
    w_arr = jnp.reshape(jnp.asarray(w, jnp.float32), (1,))
    b_arr = jnp.reshape(jnp.asarray(b, jnp.float32), (1,))
    loss, prec = pl.pallas_call(
        angular_proto_kernel,
        out_shape=(jax.ShapeDtypeStruct((1,), jnp.float32),
                   jax.ShapeDtypeStruct((1,), jnp.float32)),
        in_specs=[
            pl.BlockSpec(memory_space=pltpu.MemorySpace.VMEM),   # x (full block)
            pl.BlockSpec(memory_space=pltpu.MemorySpace.SMEM),   # w scalar
            pl.BlockSpec(memory_space=pltpu.MemorySpace.SMEM),   # b scalar
        ],
        out_specs=(
            pl.BlockSpec(memory_space=pltpu.MemorySpace.SMEM),   # loss scalar
            pl.BlockSpec(memory_space=pltpu.MemorySpace.SMEM),   # prec scalar
        ),
    )(x, w_arr, b_arr)
    return loss[0], prec[0]


if __name__ == "__main__":
    # Deterministic parameters matching nn.Parameter init in __init__.
    init_w = 10.0
    init_b = -5.0

    # Small shapes implied by the forward: N speakers, M>=2 utterances, D-dim embeddings.
    N, M, D = 8, 3, 32
    key = jax.random.PRNGKey(0)
    x = jax.random.normal(key, (N, M, D), dtype=jnp.float32)

    nloss, prec1 = angular_proto(x, init_w, init_b)
    jax.block_until_ready((nloss, prec1))
    print("KERNEL_OK")
</pallas_src>

<mosaic_0001>
module attributes {stable_mosaic.version = 11 : i64} {
  func.func @angular_proto_kernel(%arg0: memref<8x3x32xf32, #tpu.memory_space<vmem>>, %arg1: memref<1xf32, #tpu.memory_space<smem>>, %arg2: memref<1xf32, #tpu.memory_space<smem>>, %arg3: memref<1xf32, #tpu.memory_space<smem>>, %arg4: memref<1xf32, #tpu.memory_space<smem>>) attributes {dimension_semantics = [], scalar_prefetch = 0 : i64, scratch_operands = 0 : i64, tpu.core_type = #tpu.core_type<tc>} {
    %c0 = arith.constant 0 : index
    %c0_0 = arith.constant 0 : index
    %c0_1 = arith.constant 0 : index
    %0 = vector.load %arg0[%c0, %c0_0, %c0_1] : memref<8x3x32xf32, #tpu.memory_space<vmem>>, vector<8x3x32xf32>
    %1 = vector.extract_strided_slice %0 {offsets = [0, 0, 0], sizes = [8, 1, 32], strides = [1, 1, 1]} : vector<8x3x32xf32> to vector<8x1x32xf32>
    %2 = vector.shape_cast %1 : vector<8x1x32xf32> to vector<8x32xf32>
    %cst = arith.constant dense<0.000000e+00> : vector<8x32xf32>
    %3 = vector.multi_reduction <add>, %0, %cst [1] : vector<8x3x32xf32> to vector<8x32xf32>
    %4 = arith.subf %3, %2 : vector<8x32xf32>
    %cst_2 = arith.constant 5.000000e-01 : f32
    %5 = vector.broadcast %cst_2 : f32 to vector<8x32xf32>
    %6 = arith.mulf %4, %5 : vector<8x32xf32>
    %7 = arith.mulf %2, %2 : vector<8x32xf32>
    %cst_3 = arith.constant dense<0.000000e+00> : vector<8xf32>
    %8 = vector.multi_reduction <add>, %7, %cst_3 [1] : vector<8x32xf32> to vector<8xf32>
    %9 = vector.shape_cast %8 : vector<8xf32> to vector<8x1xf32>
    %10 = arith.mulf %6, %6 : vector<8x32xf32>
    %cst_4 = arith.constant dense<0.000000e+00> : vector<8xf32>
    %11 = vector.multi_reduction <add>, %10, %cst_4 [1] : vector<8x32xf32> to vector<8xf32>
    %12 = vector.shape_cast %11 : vector<8xf32> to vector<8x1xf32>
    %cst_5 = arith.constant 1.000000e-16 : f32
    %13 = vector.broadcast %cst_5 : f32 to vector<8x1xf32>
    %14 = arith.maximumf %9, %13 : vector<8x1xf32>
    %15 = math.rsqrt %14 : vector<8x1xf32>
    %16 = vector.broadcast %15 : vector<8x1xf32> to vector<8x32xf32>
    %17 = arith.mulf %2, %16 : vector<8x32xf32>
    %cst_6 = arith.constant 1.000000e-16 : f32
    %18 = vector.broadcast %cst_6 : f32 to vector<8x1xf32>
    %19 = arith.maximumf %12, %18 : vector<8x1xf32>
    %20 = math.rsqrt %19 : vector<8x1xf32>
    %21 = vector.broadcast %20 : vector<8x1xf32> to vector<8x32xf32>
    %22 = arith.mulf %6, %21 : vector<8x32xf32>
    %c0_7 = arith.constant 0 : index
    %23 = memref.load %arg1[%c0_7] : memref<1xf32, #tpu.memory_space<smem>>
    %c0_8 = arith.constant 0 : index
    %24 = memref.load %arg2[%c0_8] : memref<1xf32, #tpu.memory_space<smem>>
    %cst_9 = arith.constant dense<0.000000e+00> : vector<8x8xf32>
    %25 = tpu.matmul %17, %22, %cst_9 {dimension_numbers = #tpu.dot_dimension_numbers<[1], [1], [0], [0], [0, 0, 1, 0], [], []>} : vector<8x32xf32>, vector<8x32xf32>, vector<8x8xf32> -> vector<8x8xf32>
    %26 = vector.broadcast %23 : f32 to vector<8x8xf32>
    %27 = arith.mulf %25, %26 : vector<8x8xf32>
    %28 = vector.broadcast %24 : f32 to vector<8x8xf32>
    %29 = arith.addf %27, %28 : vector<8x8xf32>
    %30 = arith.mulf %17, %22 : vector<8x32xf32>
    %cst_10 = arith.constant dense<0.000000e+00> : vector<8xf32>
    %31 = vector.multi_reduction <add>, %30, %cst_10 [1] : vector<8x32xf32> to vector<8xf32>
    %32 = vector.shape_cast %31 : vector<8xf32> to vector<8x1xf32>
    %33 = vector.broadcast %23 : f32 to vector<8x1xf32>
    %34 = arith.mulf %32, %33 : vector<8x1xf32>
    %35 = vector.broadcast %24 : f32 to vector<8x1xf32>
    %36 = arith.addf %34, %35 : vector<8x1xf32>
    %cst_11 = arith.constant dense<0xFF800000> : vector<8xf32>
    %37 = vector.multi_reduction <maximumf>, %29, %cst_11 [1] : vector<8x8xf32> to vector<8xf32>
    %38 = vector.shape_cast %37 : vector<8xf32> to vector<8x1xf32>
    %39 = vector.broadcast %38 : vector<8x1xf32> to vector<8x8xf32>
    %40 = arith.subf %29, %39 : vector<8x8xf32>
    %41 = math.exp %40 : vector<8x8xf32>
    %cst_12 = arith.constant dense<0.000000e+00> : vector<8xf32>
    %42 = vector.multi_reduction <add>, %41, %cst_12 [1] : vector<8x8xf32> to vector<8xf32>
    %43 = vector.shape_cast %42 : vector<8xf32> to vector<8x1xf32>
    %44 = math.log %43 : vector<8x1xf32>
    %45 = arith.addf %38, %44 : vector<8x1xf32>
    %46 = arith.subf %45, %36 : vector<8x1xf32>
    %47 = vector.shape_cast %46 : vector<8x1xf32> to vector<1x8x1xf32>
    %cst_13 = arith.constant dense<0.000000e+00> : vector<1xf32>
    %48 = vector.multi_reduction <add>, %47, %cst_13 [1, 2] : vector<1x8x1xf32> to vector<1xf32>
    %49 = vector.shape_cast %48 : vector<1xf32> to vector<1x1x1xf32>
    %50 = vector.extract %49[0, 0, 0] : f32 from vector<1x1x1xf32>
    %cst_14 = arith.constant 1.250000e-01 : f32
    %51 = arith.mulf %50, %cst_14 : f32
    %c0_15 = arith.constant 0 : index
    %52 = memref.load %arg3[%c0_15] : memref<1xf32, #tpu.memory_space<smem>>
    memref.store %51, %arg3[%c0_15] : memref<1xf32, #tpu.memory_space<smem>>
    %53 = tpu.iota {dimensions = array<i32: 1>} : vector<8x8xi32>
    %54 = vector.broadcast %38 : vector<8x1xf32> to vector<8x8xf32>
    %55 = arith.cmpf oeq, %29, %54 : vector<8x8xf32>
    %c8_i32 = arith.constant 8 : i32
    %56 = vector.broadcast %c8_i32 : i32 to vector<8x8xi32>
    %57 = arith.select %55, %53, %56 : vector<8x8xi1>, vector<8x8xi32>
    %cst_16 = arith.constant dense<2147483647> : vector<8xi32>
    %58 = vector.multi_reduction <minsi>, %57, %cst_16 [1] : vector<8x8xi32> to vector<8xi32>
    %59 = vector.shape_cast %58 : vector<8xi32> to vector<8x1xi32>
    %60 = tpu.iota {dimensions = array<i32: 0>} : vector<8x1xi32>
    %61 = arith.cmpi eq, %59, %60 : vector<8x1xi32>
    %62 = arith.extui %61 : vector<8x1xi1> to vector<8x1xi32>
    %63 = arith.sitofp %62 : vector<8x1xi32> to vector<8x1xf32>
    %64 = vector.shape_cast %63 : vector<8x1xf32> to vector<1x8x1xf32>
    %cst_17 = arith.constant dense<0.000000e+00> : vector<1xf32>
    %65 = vector.multi_reduction <add>, %64, %cst_17 [1, 2] : vector<1x8x1xf32> to vector<1xf32>
    %66 = vector.shape_cast %65 : vector<1xf32> to vector<1x1x1xf32>
    %67 = vector.extract %66[0, 0, 0] : f32 from vector<1x1x1xf32>
    %cst_18 = arith.constant 1.250000e+01 : f32
    %68 = arith.mulf %67, %cst_18 : f32
    %c0_19 = arith.constant 0 : index
    %69 = memref.load %arg4[%c0_19] : memref<1xf32, #tpu.memory_space<smem>>
    memref.store %68, %arg4[%c0_19] : memref<1xf32, #tpu.memory_space<smem>>
    return
  }
}

</mosaic_0001>

<llo_original>
// kernel: tpu_custom_call.1
$region0: #{tpu_custom_call.1}
  #allocation0 [shape = 'u32[]', space=smem, size = 0x4, offset = 0x4, fixed_abs, tag = 'smem constant byte address 0x4 - core index']
  #allocation1 [shape = 'u32[144,128]{1,0:T(1,128)}', space=vmem, size = 0x12000, scoped, tag = 'internal scratch']
  #allocation2 [shape = 'f32[1]{0:T(128)S(6)}', space=smem, size = 0x200, scoped, tag = 'scoped memory for tpu_custom_call.1']
  #allocation3 [shape = 'f32[1]{0:T(128)S(6)}', space=smem, size = 0x200, scoped, tag = 'scoped memory for tpu_custom_call.1']
  %s0 = inlined_call_operand.vmem [shape: f32[8,3,32], index: 0, kind: input, shape index: {}]
  %s1 = inlined_call_operand.<no memory space> [shape: f32[1], index: 1, kind: input, shape index: {}]
  %s2 = inlined_call_operand.<no memory space> [shape: f32[1], index: 2, kind: input, shape index: {}]
  %s3 = inlined_call_operand.hbm [shape: f32[1], index: 3, kind: output, shape index: {0}]
  %s4 = inlined_call_operand.hbm [shape: f32[1], index: 4, kind: output, shape index: {1}]
  %5 = xla_tuple %s3, %s4
  %s6 = sld [smem:[#allocation0]]
  $region30: #{tpu_custom_call.1} parent=0
    _
  %s8 = ssub.s32 1, %s6
  %s9 = scalar_select 0, %s8, %s6
  %10 = sst [smem:[#allocation2]] %s1
  %11 = sst [smem:[#allocation3]] %s2
  $region1: #{tpu_custom_call.1} parent=0
    #allocation4 [shape = 'u8[512]{0}', space=smem, size = 0x200, scoped, tag = 'output window, operand 0, single buffered']
    #allocation5 [shape = 's32[1]{0}', space=sflag, size = 0x4, scoped, tag = 'scoped memory for tpu_custom_call.1']
    #allocation6 [shape = 'u8[512]{0}', space=smem, size = 0x200, scoped, tag = 'output window, operand 1, single buffered']
    #allocation7 [shape = 's32[1]{0}', space=sflag, size = 0x4, scoped, tag = 'scoped memory for tpu_custom_call.1']
    %12 = vsyncpa [#allocation5], 0
    %13 = vsyncpa [#allocation7], 0
    // Predicated region
    $region2: #{tpu_custom_call.1} parent=1 // pred_check
      _
    $region3: #{tpu_custom_call.1} parent=1 // pred_check_branch
      %15 = sbr.rel (0) target = $region5
    $region4: #{tpu_custom_call.1} parent=1 // pred_region
      _
    $region5: #{tpu_custom_call.1} parent=1 // pred_fallthru
      _
    // Predicated region
    $region6: #{tpu_custom_call.1} parent=1 // pred_check
      _
    $region7: #{tpu_custom_call.1} parent=1 // pred_check_branch
      %17 = sbr.rel (0) target = $region9
    $region8: #{tpu_custom_call.1} parent=1 // pred_region
      _
    $region9: #{tpu_custom_call.1} parent=1 // pred_fallthru
      _
    // Predicated region
    $region10: #{tpu_custom_call.1} parent=1 // pred_check
      _
    $region11: #{tpu_custom_call.1} parent=1 // pred_check_branch
      %19 = sbr.rel (0) target = $region13
    $region12: #{tpu_custom_call.1} parent=1 // pred_region
      _
    $region13: #{tpu_custom_call.1} parent=1 // pred_fallthru
      _
    %v20 = vld [vmem:[%s0] sm:$0x7]
    %v21 = vld [vmem:[%s0 + $0x4] sm:$0x7]
    %v22 = vld [vmem:[%s0 + $0x8] sm:$0x7]
    %v23 = vld [vmem:[%s0 + $0xc] sm:$0x7]
    %v24 = vld [vmem:[%s0 + $0x10] sm:$0x7]
    %v25 = vld [vmem:[%s0 + $0x14] sm:$0x7]
    %v26 = vld [vmem:[%s0 + $0x18] sm:$0x7]
    %v27 = vld [vmem:[%s0 + $0x1c] sm:$0x7]
    %vm28 = vcmask 256000
    %v29 = vsel %vm28, %v20, 0.0
    %v30 = vrot.slane %v29, 4
    %v31 = vadd.f32 %v29, %v30
    %v32 = vrot.slane %v31, 2
    %v33 = vadd.f32 %v31, %v32
    %v34 = vrot.slane %v33, 1
    %v35 = vadd.f32 %v33, %v34
    %v36 = vsel %vm28, %v21, 0.0
    %v37 = vrot.slane %v36, 4
    %v38 = vadd.f32 %v36, %v37
    %v39 = vrot.slane %v38, 2
    %v40 = vadd.f32 %v38, %v39
    %v41 = vrot.slane %v40, 1
    %v42 = vadd.f32 %v40, %v41
    %v43 = vsel %vm28, %v22, 0.0
    %v44 = vrot.slane %v43, 4
    %v45 = vadd.f32 %v43, %v44
    %v46 = vrot.slane %v45, 2
    %v47 = vadd.f32 %v45, %v46
    %v48 = vrot.slane %v47, 1
    %v49 = vadd.f32 %v47, %v48
    %v50 = vsel %vm28, %v23, 0.0
    %v51 = vrot.slane %v50, 4
    %v52 = vadd.f32 %v50, %v51
    %v53 = vrot.slane %v52, 2
    %v54 = vadd.f32 %v52, %v53
    %v55 = vrot.slane %v54, 1
    %v56 = vadd.f32 %v54, %v55
    %v57 = vsel %vm28, %v24, 0.0
    %v58 = vrot.slane %v57, 4
    %v59 = vadd.f32 %v57, %v58
    %v60 = vrot.slane %v59, 2
    %v61 = vadd.f32 %v59, %v60
    %v62 = vrot.slane %v61, 1
    %v63 = vadd.f32 %v61, %v62
    %v64 = vsel %vm28, %v25, 0.0
    %v65 = vrot.slane %v64, 4
    %v66 = vadd.f32 %v64, %v65
    %v67 = vrot.slane %v66, 2
    %v68 = vadd.f32 %v66, %v67
    %v69 = vrot.slane %v68, 1
    %v70 = vadd.f32 %v68, %v69
    %v71 = vsel %vm28, %v26, 0.0
    %v72 = vrot.slane %v71, 4
    %v73 = vadd.f32 %v71, %v72
    %v74 = vrot.slane %v73, 2
    %v75 = vadd.f32 %v73, %v74
    %v76 = vrot.slane %v75, 1
    %v77 = vadd.f32 %v75, %v76
    %v78 = vsel %vm28, %v27, 0.0
    %v79 = vrot.slane %v78, 4
    %v80 = vadd.f32 %v78, %v79
    %v81 = vrot.slane %v80, 2
    %v82 = vadd.f32 %v80, %v81
    %v83 = vrot.slane %v82, 1
    %v84 = vadd.f32 %v82, %v83
    %v85 = vsub.f32 %v35, %v20
    %v86 = vsub.f32 %v42, %v21
    %v87 = vsub.f32 %v49, %v22
    %v88 = vsub.f32 %v56, %v23
    %v89 = vsub.f32 %v63, %v24
    %v90 = vsub.f32 %v70, %v25
    %v91 = vsub.f32 %v77, %v26
    %v92 = vsub.f32 %v84, %v27
    %v93 = vmul.f32 %v85, 0.5
    %v94 = vmul.f32 %v86, 0.5
    %v95 = vmul.f32 %v87, 0.5
    %v96 = vmul.f32 %v88, 0.5
    %v97 = vmul.f32 %v89, 0.5
    %v98 = vmul.f32 %v90, 0.5
    %v99 = vmul.f32 %v91, 0.5
    %v100 = vmul.f32 %v92, 0.5
    %v101 = vmul.f32 %v20, %v20
    %v102 = vmul.f32 %v21, %v21
    %v103 = vmul.f32 %v22, %v22
    %v104 = vmul.f32 %v23, %v23
    %v105 = vmul.f32 %v24, %v24
    %v106 = vmul.f32 %v25, %v25
    %v107 = vmul.f32 %v26, %v26
    %v108 = vmul.f32 %v27, %v27
    %v117 = vrot.slane %v102, 7
    %vm118 = vcmask 1041409
    %v119 = vsel %vm118, %v117, %v101
    %v120 = vrot.slane %v103, 6
    %vm121 = vcmask 1042434
    %v122 = vsel %vm121, %v120, %v119
    %v123 = vrot.slane %v104, 5
    %vm124 = vcmask 1043459
    %v125 = vsel %vm124, %v123, %v122
    %v126 = vrot.slane %v105, 4
    %vm127 = vcmask 1044484
    %v128 = vsel %vm127, %v126, %v125
    %v129 = vrot.slane %v106, 3
    %vm130 = vcmask 1045509
    %v131 = vsel %vm130, %v129, %v128
    %v132 = vrot.slane %v107, 2
    %vm133 = vcmask 1046534
    %v134 = vsel %vm133, %v132, %v131
    %v135 = vrot.slane %v108, 1
    %vm136 = vcmask 1047559
    %v137 = vsel %vm136, %v135, %v134
    %vm139 = vcmask 261120
    %v140 = vsel %vm139, %v137, 0.0
    %141 = vadd.xlane.f32.xlu0 %v140
    %v142 = vpop.xlane.xlu0 %141
    %v143 = vmul.f32 %v93, %v93
    %v144 = vmul.f32 %v94, %v94
    %v145 = vmul.f32 %v95, %v95
    %v146 = vmul.f32 %v96, %v96
    %v147 = vmul.f32 %v97, %v97
    %v148 = vmul.f32 %v98, %v98
    %v149 = vmul.f32 %v99, %v99
    %v150 = vmul.f32 %v100, %v100
    %v159 = vrot.slane %v144, 7
    %v160 = vsel %vm118, %v159, %v143
    %v161 = vrot.slane %v145, 6
    %v162 = vsel %vm121, %v161, %v160
    %v163 = vrot.slane %v146, 5
    %v164 = vsel %vm124, %v163, %v162
    %v165 = vrot.slane %v147, 4
    %v166 = vsel %vm127, %v165, %v164
    %v167 = vrot.slane %v148, 3
    %v168 = vsel %vm130, %v167, %v166
    %v169 = vrot.slane %v149, 2
    %v170 = vsel %vm133, %v169, %v168
    %v171 = vrot.slane %v150, 1
    %v172 = vsel %vm136, %v171, %v170
    %v174 = vsel %vm139, %v172, 0.0
    %175 = vadd.xlane.f32.xlu0 %v174
    %v176 = vpop.xlane.xlu0 %175
    %v177 = vmax.f32 %v142, 1e-16
    %v178 = vrsqrt.pop %v177
    %v180 = vrot.slane %v178, 1
    %v181 = vrot.slane %v178, 2
    %v182 = vrot.slane %v178, 3
    %v183 = vrot.slane %v178, 4
    %v184 = vrot.slane %v178, 5
    %v185 = vrot.slane %v178, 6
    %v186 = vrot.slane %v178, 7
    %v195 = vmul.f32 %v20, %v178
    %v196 = vmul.f32 %v21, %v180
    %v197 = vmul.f32 %v22, %v181
    %v198 = vmul.f32 %v23, %v182
    %v199 = vmul.f32 %v24, %v183
    %v200 = vmul.f32 %v25, %v184
    %v201 = vmul.f32 %v26, %v185
    %v202 = vmul.f32 %v27, %v186
    %v203 = vmax.f32 %v176, 1e-16
    %v204 = vrsqrt.pop %v203
    %v206 = vrot.slane %v204, 1
    %v207 = vrot.slane %v204, 2
    %v208 = vrot.slane %v204, 3
    %v209 = vrot.slane %v204, 4
    %v210 = vrot.slane %v204, 5
    %v211 = vrot.slane %v204, 6
    %v212 = vrot.slane %v204, 7
    %v221 = vmul.f32 %v93, %v204
    %v222 = vmul.f32 %v94, %v206
    %v223 = vmul.f32 %v95, %v207
    %v224 = vmul.f32 %v96, %v208
    %v225 = vmul.f32 %v97, %v209
    %v226 = vmul.f32 %v98, %v210
    %v227 = vmul.f32 %v99, %v211
    %v228 = vmul.f32 %v100, %v212
    %s229 = sld [smem:[#allocation2]]
    %s230 = sld [smem:[#allocation3]]
    %v239 = vrot.slane %v196, 7
    %v240 = vsel %vm118, %v239, %v195
    %v241 = vrot.slane %v197, 6
    %v242 = vsel %vm121, %v241, %v240
    %v243 = vrot.slane %v198, 5
    %v244 = vsel %vm124, %v243, %v242
    %v245 = vrot.slane %v199, 4
    %v246 = vsel %vm127, %v245, %v244
    %v247 = vrot.slane %v200, 3
    %v248 = vsel %vm130, %v247, %v246
    %v249 = vrot.slane %v201, 2
    %v250 = vsel %vm133, %v249, %v248
    %v251 = vrot.slane %v202, 1
    %v252 = vsel %vm136, %v251, %v250
    %v261 = vrot.slane %v222, 7
    %v262 = vsel %vm118, %v261, %v221
    %v263 = vrot.slane %v223, 6
    %v264 = vsel %vm121, %v263, %v262
    %v265 = vrot.slane %v224, 5
    %v266 = vsel %vm124, %v265, %v264
    %v267 = vrot.slane %v225, 4
    %v268 = vsel %vm127, %v267, %v266
    %v269 = vrot.slane %v226, 3
    %v270 = vsel %vm130, %v269, %v268
    %v271 = vrot.slane %v227, 2
    %v272 = vsel %vm133, %v271, %v270
    %v273 = vrot.slane %v228, 1
    %v274 = vsel %vm136, %v273, %v272
    %v275 = vsel %vm139, %v252, 0
    %v277 = vsel %vm139, %v274, 0
    %279 = vmatprep.subr.mxu0 0.0
    %280 = vmatpush1.xpose.msra.mxu0 %v277
    %281 = vmatprep.subr.mxu0 0.0
    %282 = vmatpush1.xpose.msra.mxu0 0.0
    %283 = vmatprep.subr.mxu0 0.0
    %284 = vmatpush1.xpose.msra.mxu0 0.0
    %285 = vmatprep.subr.mxu0 0.0
    %286 = vmatpush1.xpose.msra.mxu0 0.0
    %287 = vmatprep.subr.mxu0 0.0
    %288 = vmatpush1.xpose.msra.mxu0 0.0
    %289 = vmatprep.subr.mxu0 0.0
    %290 = vmatpush1.xpose.msra.mxu0 0.0
    %291 = vmatprep.subr.mxu0 0.0
    %292 = vmatpush1.xpose.msra.mxu0 0.0
    %293 = vmatprep.subr.mxu0 0.0
    %294 = vmatpush1.xpose.msra.mxu0 0.0
    %295 = vmatprep.subr.mxu0 0.0
    %296 = vmatpush1.xpose.msra.mxu0 0.0
    %297 = vmatprep.subr.mxu0 0.0
    %298 = vmatpush1.xpose.msra.mxu0 0.0
    %299 = vmatprep.subr.mxu0 0.0
    %300 = vmatpush1.xpose.msra.mxu0 0.0
    %301 = vmatprep.subr.mxu0 0.0
    %302 = vmatpush1.xpose.msra.mxu0 0.0
    %303 = vmatprep.subr.mxu0 0.0
    %304 = vmatpush1.xpose.msra.mxu0 0.0
    %305 = vmatprep.subr.mxu0 0.0
    %306 = vmatpush1.xpose.msra.mxu0 0.0
    %307 = vmatprep.subr.mxu0 0.0
    %308 = vmatpush1.xpose.msra.mxu0 0.0
    %309 = vmatprep.subr.mxu0 0.0
    %310 = vmatpush1.xpose.msra.mxu0 0.0
    %311 = vmatprep.subr.mxu0 0.0
    %312 = vmatpush1.xpose.msra.mxu0 0.0
    %313 = vmatprep.subr.mxu0 0.0
    %314 = vmatpush1.xpose.msra.mxu0 0.0
    %315 = vmatprep.subr.mxu0 0.0
    %316 = vmatpush1.xpose.msra.mxu0 0.0
    %317 = vmatprep.subr.mxu0 0.0
    %318 = vmatpush1.xpose.msra.mxu0 0.0
    %319 = vmatprep.subr.mxu0 0.0
    %320 = vmatpush1.xpose.msra.mxu0 0.0
    %321 = vmatprep.subr.mxu0 0.0
    %322 = vmatpush1.xpose.msra.mxu0 0.0
    %323 = vmatprep.subr.mxu0 0.0
    %324 = vmatpush1.xpose.msra.mxu0 0.0
    %325 = vmatprep.subr.mxu0 0.0
    %326 = vmatpush1.xpose.msra.mxu0 0.0
    %327 = vmatprep.subr.mxu0 0.0
    %328 = vmatpush1.xpose.msra.mxu0 0.0
    %329 = vmatprep.subr.mxu0 0.0
    %330 = vmatpush1.xpose.msra.mxu0 0.0
    %331 = vmatprep.subr.mxu0 0.0
    %332 = vmatpush1.xpose.msra.mxu0 0.0
    %333 = vmatprep.subr.mxu0 0.0
    %334 = vmatpush1.xpose.msra.mxu0 0.0
    %335 = vmatprep.subr.mxu0 0.0
    %336 = vmatpush1.xpose.msra.mxu0 0.0
    %337 = vmatprep.subr.mxu0 0.0
    %338 = vmatpush1.xpose.msra.mxu0 0.0
    %339 = vmatprep.subr.mxu0 0.0
    %340 = vmatpush1.xpose.msra.mxu0 0.0
    %341 = vmatprep.subr.mxu0 0.0
    %342 = vmatpush1.xpose.msra.mxu0 0.0
    %343 = vmatprep.mubr.f32.mxu0 0.0
    %344 = vmatmul.mubr.f32.gmra.mrb[0].mxu0 %v275
    %v345 = vpop.f32.mrb[0].mxu0
    %v346 = vadd.f32 0.0, %v345
    %v347 = vpop.f32.mrb[0].mxu0
    %348 = vdwg.mxu0
    %v349 = vstv %s229
    %v350 = vmul.f32 %v346, %v349
    %v351 = vstv %s230
    %v352 = vadd.f32 %v350, %v351
    %v353 = vmul.f32 %v195, %v221
    %v354 = vmul.f32 %v196, %v222
    %v355 = vmul.f32 %v197, %v223
    %v356 = vmul.f32 %v198, %v224
    %v357 = vmul.f32 %v199, %v225
    %v358 = vmul.f32 %v200, %v226
    %v359 = vmul.f32 %v201, %v227
    %v360 = vmul.f32 %v202, %v228
    %v369 = vrot.slane %v354, 7
    %v370 = vsel %vm118, %v369, %v353
    %v371 = vrot.slane %v355, 6
    %v372 = vsel %vm121, %v371, %v370
    %v373 = vrot.slane %v356, 5
    %v374 = vsel %vm124, %v373, %v372
    %v375 = vrot.slane %v357, 4
    %v376 = vsel %vm127, %v375, %v374
    %v377 = vrot.slane %v358, 3
    %v378 = vsel %vm130, %v377, %v376
    %v379 = vrot.slane %v359, 2
    %v380 = vsel %vm133, %v379, %v378
    %v381 = vrot.slane %v360, 1
    %v382 = vsel %vm136, %v381, %v380
    %v384 = vsel %vm139, %v382, 0.0
    %385 = vadd.xlane.f32.xlu0 %v384
    %v386 = vpop.xlane.xlu0 %385
    %v387 = vmul.f32 %v386, %v349
    %v388 = vadd.f32 %v387, %v351
    %vm389 = vcmask 64512
    %v390 = vsel %vm389, %v352, -inf
    %391 = vmax.xlane.f32.xlu0 %v390
    %v392 = vpop.xlane.xlu0 %391
    %v393 = vsub.f32 %v352, %v392
    %v394 = vmul.f32 %v393, 1.442695
    %v395 = vpow.pop %v394
    %v396 = vsel %vm389, %v395, 0.0
    %397 = vadd.xlane.f32.xlu0 %v396
    %v398 = vpop.xlane.xlu0 %397
    %v399 = vlog2.pop %v398
    %v400 = vmul.f32 %v399, 0.6931472
    %v401 = vadd.f32 %v392, %v400
    %v402 = vsub.f32 %v401, %v388
    %vm403 = vcmask 7168
    %v404 = vsel %vm403, %v402, 0.0
    %405 = vadd.xlane.f32.xlu0 %v404
    %v406 = vpop.xlane.xlu0 %405
    %v407 = vrot.slane %v406, 4
    %v408 = vadd.f32 %v406, %v407
    %v409 = vrot.slane %v408, 2
    %v410 = vadd.f32 %v408, %v409
    %v411 = vrot.slane %v410, 1
    %v412 = vadd.f32 %v410, %v411
    %s413 = vtos %v412
    %s414 = smul.f32 %s413, 0.125
    %s415 = scalar_lea.smem [#allocation4], 0
    %416 = sst [smem:[%s415]] %s414
    %v417 = vlaneseq
    %v418 = vand.u32 %v417, 127
    %vm419 = vcmp.eq.f32.partialorder %v352, %v392
    %v420 = vsel %vm419, %v418, 8
    %v421 = vsel %vm389, %v420, 2147483647
    %v422 = vand.u32 %v421, 65535
    %v423 = vshra.s32 %v421, 16
    %v424 = vcvt.s32.f32 %v422
    %v425 = vcvt.s32.f32 %v423
    %426 = vmin.xlane.f32.xlu0 %v425
    %v427 = vpop.xlane.xlu0 %426
    %vm428 = vcmp.eq.f32.partialorder %v425, %v427
    %v429 = vsel %vm428, %v424, inf
    %430 = vmin.xlane.f32.xlu0 %v429
    %v431 = vpop.xlane.xlu0 %430
    %v432 = vcvt.f32.s32 %v431
    %v433 = vcvt.f32.s32 %v427
    %v434 = vshll.u32 %v433, 16
    %v435 = vadd.s32 %v434, %v432
    %v436 = vlaneseq
    %v437 = vshrl.u32 %v436, 7
    %vm438 = vcmp.eq.s32.totalorder %v435, %v437
    %v439 = vsel %vm438, 1, 0
    %v440 = vcvt.s32.f32 %v439
    %v441 = vsel %vm403, %v440, 0.0
    %442 = vadd.xlane.f32.xlu0 %v441
    %v443 = vpop.xlane.xlu0 %442
    %v444 = vrot.slane %v443, 4
    %v445 = vadd.f32 %v443, %v444
    %v446 = vrot.slane %v445, 2
    %v447 = vadd.f32 %v445, %v446
    %v448 = vrot.slane %v447, 1
    %v449 = vadd.f32 %v447, %v448
    %s450 = vtos %v449
    %s451 = smul.f32 %s450, 12.5
    %s452 = scalar_lea.smem [#allocation6], 0
    %453 = sst [smem:[%s452]] %s451
    // Predicated region
    $region14: #{tpu_custom_call.1} parent=1 // pred_check
      _
    $region15: #{tpu_custom_call.1} parent=1 // pred_check_branch
      %455 = sbr.rel (0) target = $region17
    $region16: #{tpu_custom_call.1} parent=1 // pred_region
      %s457 = ssub.s32 16, 16
      %458 = vsyncadd [#allocation5], %s457
      %461 = dma.smem_to_hbm [#allocation4], 16, %s3, [#allocation5]
    $region17: #{tpu_custom_call.1} parent=1 // pred_fallthru
      _
    // Predicated region
    $region18: #{tpu_custom_call.1} parent=1 // pred_check
      _
    $region19: #{tpu_custom_call.1} parent=1 // pred_check_branch
      %463 = sbr.rel (0) target = $region21
    $region20: #{tpu_custom_call.1} parent=1 // pred_region
      %s465 = ssub.s32 16, 16
      %466 = vsyncadd [#allocation7], %s465
      %469 = dma.smem_to_hbm [#allocation6], 16, %s4, [#allocation7]
    $region21: #{tpu_custom_call.1} parent=1 // pred_fallthru
      _
    // Predicated region
    $region22: #{tpu_custom_call.1} parent=1 // pred_check
      _
    $region23: #{tpu_custom_call.1} parent=1 // pred_check_branch
      %471 = sbr.rel (0) target = $region25
    $region24: #{tpu_custom_call.1} parent=1 // pred_region
      %472 = dma.done [#allocation5], 16
    $region25: #{tpu_custom_call.1} parent=1 // pred_fallthru
      _
    // Predicated region
    $region26: #{tpu_custom_call.1} parent=1 // pred_check
      _
    $region27: #{tpu_custom_call.1} parent=1 // pred_check_branch
      %474 = sbr.rel (0) target = $region29
    $region28: #{tpu_custom_call.1} parent=1 // pred_region
      %475 = dma.done [#allocation7], 16
    $region29: #{tpu_custom_call.1} parent=1 // pred_fallthru
      _
    %476 = sfence
    %477 = vsyncpa [#allocation5], 1
    %478 = vsyncpa [#allocation7], 1

</llo_original>
